<compile_context>
chip_gen: v5e
topology: v5e:2x2
jax: 0.10.0
libtpu: 0.0.40
codegen_flags: <defaults>
</compile_context>

<pallas_src>
import functools

import numpy as np
import jax
import jax.numpy as jnp
from jax import lax
from jax.experimental import pallas as pl
from jax.experimental.pallas import tpu as pltpu

_LANE = 128
_MAX_TILE_ROWS = 4096       # (4096, 128) f32 tile = 2 MiB per input buffer
_NCORES = 2                 # leading 'parallel' grid axis (v7x megacore);
                            # harmless serial split on single-TC v5e/v6e
_GRAM_TILE_LANES = 512      # K-tile width for the Gram contraction


# ----------------------------------------------------------------------------
# Streaming MSE kernel
# ----------------------------------------------------------------------------
def _mse_stream_kernel(y_ref, t_ref, o_ref, acc_ref, *,
                       tile_rows, rpc, total_tiles, valid_rows, n_elems):
    c = pl.program_id(0)            # parallel axis (core)
    r = pl.program_id(1)            # arbitrary axis (row tiles)

    # Init the small vector accumulator once per core.
    @pl.when(r == 0)
    def _():
        acc_ref[...] = jnp.zeros_like(acc_ref)

    tile_idx = c * rpc + r
    diff = y_ref[...].astype(jnp.float32) - t_ref[...].astype(jnp.float32)
    sq = diff * diff

    # Hot path: fully-valid interior tiles, no masking work.
    @pl.when(tile_idx < total_tiles - 1)
    def _():
        acc_ref[...] += jnp.sum(sq.reshape(tile_rows // 8, 8, _LANE), axis=0)

    # Last real tile + overhang steps: mask rows beyond the valid range.
    # Use jnp.where (select) so Pallas partial-block padding garbage
    # (possibly NaN/Inf) cannot poison the accumulator.
    @pl.when(tile_idx >= total_tiles - 1)
    def _():
        row0 = tile_idx * tile_rows
        rows = lax.broadcasted_iota(jnp.int32, sq.shape, 0) + row0
        masked = jnp.where(rows < valid_rows, sq, 0.0)
        acc_ref[...] += jnp.sum(masked.reshape(tile_rows // 8, 8, _LANE),
                                axis=0)

    # Finalize once per core: single cross-lane reduce of (8, 128).
    @pl.when(r == rpc - 1)
    def _():
        val = jnp.sum(acc_ref[...]) / n_elems
        o_ref[...] = jnp.full(o_ref.shape, val, dtype=jnp.float32)


# ----------------------------------------------------------------------------
# Diversity-regularizer kernel (Gram of kH slices + thresholded cosine sim)
# ----------------------------------------------------------------------------
def _gram_reg_kernel(a_ref, o_ref, g_ref, *, k, kp, tau):
    t = pl.program_id(0)

    @pl.when(t == 0)
    def _():
        g_ref[...] = jnp.zeros_like(g_ref)

    # Gram accumulation on the MXU (contract dim 1 of both operands == a @ a.T,
    # f32 accumulation, no explicit transpose of the slab).
    a = a_ref[...]
    g_ref[...] += lax.dot_general(a, a, (((1,), (1,)), ((), ())),
                                  preferred_element_type=jnp.float32)

    @pl.when(t == pl.num_programs(0) - 1)
    def _():
        g = g_ref[...]                                        # (kp, kp)
        ii = lax.broadcasted_iota(jnp.int32, (kp, kp), 0)
        jj = lax.broadcasted_iota(jnp.int32, (kp, kp), 1)
        gd = jnp.where(ii == jj, g, 0.0)
        d_row = jnp.sum(gd, axis=1, keepdims=True)            # ||S_i||^2
        d_col = jnp.sum(gd, axis=0, keepdims=True)            # ||S_j||^2
        inv = (lax.rsqrt(jnp.where(d_row > 0.0, d_row, 1.0)) *
               lax.rsqrt(jnp.where(d_col > 0.0, d_col, 1.0)))  # EUP rsqrt
        sim = jnp.where((d_row > 0.0) & (d_col > 0.0), g * inv, 0.0)

        valid = (ii < k) & (jj < k) & (ii != jj)
        keep = valid & (sim > tau) & (sim <= 1.0)              # match reference
        reg = jnp.sum(jnp.where(keep, sim, 0.0))
        o_ref[...] = jnp.full(o_ref.shape, reg, dtype=jnp.float32)


def _diversity_regularizer(w, tau):
    """reg = sum_{i!=j, tau<sim<=1} cos(W[:,:,i,:], W[:,:,j,:])."""
    o_ch, i_ch, k_h, k_w = (int(s) for s in w.shape)
    k = k_h
    a = jnp.transpose(w.astype(jnp.float32), (2, 0, 1, 3)).reshape(
        k, o_ch * i_ch * k_w)

    kp = max(8, ((k + 7) // 8) * 8)
    lp0 = a.shape[1]
    tile_l = min(((lp0 + _LANE - 1) // _LANE) * _LANE, _GRAM_TILE_LANES)
    lp = ((lp0 + tile_l - 1) // tile_l) * tile_l
    a = jnp.pad(a, ((0, kp - k), (0, lp - lp0)))               # zero-pad: Gram-safe
    n_l = lp // tile_l

    out = pl.pallas_call(
        functools.partial(_gram_reg_kernel, k=k, kp=kp, tau=float(tau)),
        out_shape=jax.ShapeDtypeStruct((1, _LANE), jnp.float32),
        grid_spec=pltpu.PrefetchScalarGridSpec(
            num_scalar_prefetch=0,
            grid=(n_l,),
            in_specs=[pl.BlockSpec((kp, tile_l), lambda t: (0, t))],
            out_specs=pl.BlockSpec((1, _LANE), lambda t: (0, 0)),
            scratch_shapes=[pltpu.VMEM((kp, kp), jnp.float32)],
        ),
        compiler_params=pltpu.CompilerParams(
            dimension_semantics=("arbitrary",),
            vmem_limit_bytes=32 * 1024 * 1024),
    )(a)
    return out[0, 0]


# ----------------------------------------------------------------------------
# Wrapper: forward(output, target) = MSE(output, target) + alpha * reg
# ----------------------------------------------------------------------------
def enhance_diversity_loss(output, target, conv_weights, alpha=0.0005, tau=0.2):
    assert 0.0 < tau < 1.0, "The tau value should be between 0 and 1"
    assert output.shape == target.shape

    # Regularizer from the last 4-D conv parameter (matches the reference loop).
    reg = _diversity_regularizer(conv_weights[-1], tau)

    # --- streaming MSE operands: native dtype, no wrapper cast / no pad ---
    n = int(output.size)
    y_flat = output.reshape(-1)
    t_flat = target.reshape(-1)
    valid_rows = n // _LANE
    bulk = valid_rows * _LANE

    if valid_rows > 0:
        if bulk == n:
            y2 = y_flat.reshape(valid_rows, _LANE)        # layout reshape only
            t2 = t_flat.reshape(valid_rows, _LANE)
        else:
            y2 = lax.slice(y_flat, (0,), (bulk,)).reshape(valid_rows, _LANE)
            t2 = lax.slice(t_flat, (0,), (bulk,)).reshape(valid_rows, _LANE)
        arr_rows = valid_rows
    else:  # degenerate tiny input: everything goes through the XLA tail path
        y2 = jnp.zeros((8, _LANE), output.dtype)
        t2 = jnp.zeros((8, _LANE), target.dtype)
        arr_rows = 8

    # Block rows must be a multiple of 8 (sublane); Pallas pads ragged blocks,
    # the kernel masks them.
    tile_rows = min(_MAX_TILE_ROWS, ((arr_rows + 7) // 8) * 8)
    total_tiles = (arr_rows + tile_rows - 1) // tile_rows
    rpc = (total_tiles + _NCORES - 1) // _NCORES          # row tiles per core

    kernel = functools.partial(
        _mse_stream_kernel, tile_rows=tile_rows, rpc=rpc,
        total_tiles=total_tiles, valid_rows=valid_rows, n_elems=float(n))

    def yt_map(c, r):
        # Clamp overhang (c, r) steps to the last real tile; kernel masks them.
        return (jnp.minimum(c * rpc + r, total_tiles - 1), 0)

    out = pl.pallas_call(
        kernel,
        out_shape=jax.ShapeDtypeStruct((1, _NCORES * _LANE), jnp.float32),
        grid_spec=pltpu.PrefetchScalarGridSpec(
            num_scalar_prefetch=0,
            grid=(_NCORES, rpc),
            in_specs=[
                pl.BlockSpec((tile_rows, _LANE), yt_map),
                pl.BlockSpec((tile_rows, _LANE), yt_map),
            ],
            out_specs=pl.BlockSpec((1, _LANE), lambda c, r: (0, c)),
            scratch_shapes=[pltpu.VMEM((8, _LANE), jnp.float32)],
        ),
        compiler_params=pltpu.CompilerParams(
            dimension_semantics=("parallel", "arbitrary"),
            vmem_limit_bytes=48 * 1024 * 1024),
    )(y2, t2)

    mse = out[0, 0] + out[0, _LANE]                       # per-core partials
    if bulk < n:                                          # <128-element tail
        y_tail = lax.slice(y_flat, (bulk,), (n,)).astype(jnp.float32)
        t_tail = lax.slice(t_flat, (bulk,), (n,)).astype(jnp.float32)
        mse = mse + jnp.sum((y_tail - t_tail) ** 2) / float(n)

    return mse + alpha * reg


# ----------------------------------------------------------------------------
# Validation against a direct NumPy transcription of the PyTorch module
# ----------------------------------------------------------------------------
def _reference(output, target, conv_weights, alpha, tau):
    w = np.asarray(conv_weights[-1], dtype=np.float32)
    k = w.shape[2]
    sim = np.zeros((k, k), dtype=np.float32)
    for i in range(k):
        for j in range(k):
            si = w[:, :, i, :]
            sj = w[:, :, j, :]
            t_sim = float((si * sj).sum() /
                          (np.linalg.norm(si) * np.linalg.norm(sj)))
            if tau < t_sim <= 1.0 and i != j:
                sim[i, j] = t_sim
    reg = sim.sum()
    y = np.asarray(output, dtype=np.float64)
    t = np.asarray(target, dtype=np.float64)
    return float(np.mean((y - t) ** 2) + alpha * reg)


if __name__ == "__main__":
    key = jax.random.PRNGKey(0)
    k1, k2, k3, k4, k5 = jax.random.split(key, 5)

    # Synthetic "network" conv parameters (OIHW). Only the last one matters.
    conv_w1 = 0.1 * jax.random.normal(k1, (8, 4, 3, 3), jnp.float32)
    # Correlate the kH slices of the last conv so some cosine sims exceed tau.
    base = jax.random.normal(k2, (8, 8, 1, 3), jnp.float32)
    conv_w2 = jnp.broadcast_to(base, (8, 8, 3, 3)) + \
        0.4 * jax.random.normal(k5, (8, 8, 3, 3), jnp.float32)
    conv_weights = [conv_w1, conv_w2]

    def check(out_shape, ka, kb):
        output = jax.random.normal(ka, out_shape, jnp.float32)
        target = jax.random.normal(kb, out_shape, jnp.float32)
        res = enhance_diversity_loss(output, target, conv_weights,
                                     alpha=0.0005, tau=0.2)
        jax.block_until_ready(res)
        ref = _reference(output, target, conv_weights, alpha=0.0005, tau=0.2)
        assert abs(float(res) - ref) <= 1e-3 * (1.0 + abs(ref)), \
            (out_shape, float(res), ref)

    # Primary small case (single tile; core 1 fully masked overhang).
    check((2, 4, 16, 16), k3, k4)
    # Single large ragged-ish tile, both cores see the same clamped tile.
    k6, k7 = jax.random.split(k3)
    check((2, 8, 128, 144), k6, k7)
    # Non-128-divisible case (XLA tail path + partial 8-row block masking).
    k8, k9 = jax.random.split(k4)
    check((2, 3, 7, 11), k8, k9)
    # Multi-tile case: hot unmasked tiles on core 0, ragged + overhang on core 1.
    k10, k11 = jax.random.split(k5)
    check((4, 8, 160, 256), k10, k11)

    print("KERNEL_OK")
</pallas_src>

<mosaic_0001>
module attributes {stable_mosaic.version = 11 : i64} {
  func.func @_gram_reg_kernel(%arg0: i32, %arg1: memref<8x256xf32, #tpu.memory_space<vmem>>, %arg2: memref<1x128xf32, #tpu.memory_space<vmem>>, %arg3: memref<8x8xf32, #tpu.memory_space<vmem>>) attributes {dimension_semantics = [#tpu.dimension_semantics<arbitrary>], iteration_bounds = array<i64: 1>, scalar_prefetch = 0 : i64, scratch_operands = 1 : i64, tpu.core_type = #tpu.core_type<tc>, window_params = [{transform_indices = @transform_0, window_bounds = array<i64: 8, 256>}, {pipeline_mode = #tpu.pipeline_mode<synchronous>, transform_indices = @transform_1, window_bounds = array<i64: 1, 128>}]} {
    %c0_i32 = arith.constant 0 : i32
    %0 = arith.cmpi eq, %arg0, %c0_i32 : i32
    %1 = arith.extui %0 : i1 to i32
    %c0_i32_0 = arith.constant 0 : i32
    %2 = arith.cmpi ne, %1, %c0_i32_0 : i32
    scf.if %2 {
      %cst_8 = arith.constant 0.000000e+00 : f32
      %11 = vector.broadcast %cst_8 : f32 to vector<8x8xf32>
      %c0_9 = arith.constant 0 : index
      %c0_10 = arith.constant 0 : index
      %12 = vector.load %arg3[%c0_9, %c0_10] : memref<8x8xf32, #tpu.memory_space<vmem>>, vector<8x8xf32>
      tpu.vector_store %arg3[%c0_9, %c0_10], %11 {strides = array<i32>} : memref<8x8xf32, #tpu.memory_space<vmem>>, vector<8x8xf32>,
    } else {
    }
    %c0 = arith.constant 0 : index
    %c0_1 = arith.constant 0 : index
    %3 = vector.load %arg1[%c0, %c0_1] : memref<8x256xf32, #tpu.memory_space<vmem>>, vector<8x256xf32>
    %c0_2 = arith.constant 0 : index
    %c0_3 = arith.constant 0 : index
    %4 = vector.load %arg3[%c0_2, %c0_3] : memref<8x8xf32, #tpu.memory_space<vmem>>, vector<8x8xf32>
    %cst = arith.constant dense<0.000000e+00> : vector<8x8xf32>
    %5 = tpu.matmul %3, %3, %cst {dimension_numbers = #tpu.dot_dimension_numbers<[1], [1], [0], [0], [0, 0, 1, 0], [], []>} : vector<8x256xf32>, vector<8x256xf32>, vector<8x8xf32> -> vector<8x8xf32>
    %6 = arith.addf %4, %5 : vector<8x8xf32>
    %c0_4 = arith.constant 0 : index
    %c0_5 = arith.constant 0 : index
    %7 = vector.load %arg3[%c0_4, %c0_5] : memref<8x8xf32, #tpu.memory_space<vmem>>, vector<8x8xf32>
    tpu.vector_store %arg3[%c0_4, %c0_5], %6 {strides = array<i32>} : memref<8x8xf32, #tpu.memory_space<vmem>>, vector<8x8xf32>,
    %c0_i32_6 = arith.constant 0 : i32
    %8 = arith.cmpi eq, %arg0, %c0_i32_6 : i32
    %9 = arith.extui %8 : i1 to i32
    %c0_i32_7 = arith.constant 0 : i32
    %10 = arith.cmpi ne, %9, %c0_i32_7 : i32
    scf.if %10 {
      %c0_8 = arith.constant 0 : index
      %c0_9 = arith.constant 0 : index
      %11 = vector.load %arg3[%c0_8, %c0_9] : memref<8x8xf32, #tpu.memory_space<vmem>>, vector<8x8xf32>
      %12 = tpu.iota {dimensions = array<i32: 0>} : vector<8x8xi32>
      %13 = tpu.iota {dimensions = array<i32: 1>} : vector<8x8xi32>
      %14 = arith.cmpi eq, %12, %13 : vector<8x8xi32>
      %cst_10 = arith.constant 0.000000e+00 : f32
      %15 = vector.broadcast %cst_10 : f32 to vector<8x8xf32>
      %16 = arith.select %14, %11, %15 : vector<8x8xi1>, vector<8x8xf32>
      %cst_11 = arith.constant dense<0.000000e+00> : vector<8xf32>
      %17 = vector.multi_reduction <add>, %16, %cst_11 [1] : vector<8x8xf32> to vector<8xf32>
      %18 = vector.shape_cast %17 : vector<8xf32> to vector<8x1xf32>
      %cst_12 = arith.constant dense<0.000000e+00> : vector<8xf32>
      %19 = vector.multi_reduction <add>, %16, %cst_12 [0] : vector<8x8xf32> to vector<8xf32>
      %20 = vector.shape_cast %19 : vector<8xf32> to vector<1x8xf32>
      %cst_13 = arith.constant 0.000000e+00 : f32
      %21 = vector.broadcast %cst_13 : f32 to vector<8x1xf32>
      %22 = arith.cmpf ogt, %18, %21 : vector<8x1xf32>
      %cst_14 = arith.constant 1.000000e+00 : f32
      %23 = vector.broadcast %cst_14 : f32 to vector<8x1xf32>
      %24 = arith.select %22, %18, %23 : vector<8x1xi1>, vector<8x1xf32>
      %25 = math.rsqrt %24 : vector<8x1xf32>
      %cst_15 = arith.constant 0.000000e+00 : f32
      %26 = vector.broadcast %cst_15 : f32 to vector<1x8xf32>
      %27 = arith.cmpf ogt, %20, %26 : vector<1x8xf32>
      %cst_16 = arith.constant 1.000000e+00 : f32
      %28 = vector.broadcast %cst_16 : f32 to vector<1x8xf32>
      %29 = arith.select %27, %20, %28 : vector<1x8xi1>, vector<1x8xf32>
      %30 = math.rsqrt %29 : vector<1x8xf32>
      %31 = vector.broadcast %25 : vector<8x1xf32> to vector<8x8xf32>
      %32 = vector.broadcast %30 : vector<1x8xf32> to vector<8x8xf32>
      %33 = arith.mulf %31, %32 : vector<8x8xf32>
      %cst_17 = arith.constant 0.000000e+00 : f32
      %34 = vector.broadcast %cst_17 : f32 to vector<8x1xf32>
      %35 = arith.cmpf ogt, %18, %34 : vector<8x1xf32>
      %cst_18 = arith.constant 0.000000e+00 : f32
      %36 = vector.broadcast %cst_18 : f32 to vector<1x8xf32>
      %37 = arith.cmpf ogt, %20, %36 : vector<1x8xf32>
      %38 = vector.broadcast %35 : vector<8x1xi1> to vector<8x8xi1>
      %39 = vector.broadcast %37 : vector<1x8xi1> to vector<8x8xi1>
      %40 = arith.andi %38, %39 : vector<8x8xi1>
      %41 = arith.mulf %11, %33 : vector<8x8xf32>
      %cst_19 = arith.constant 0.000000e+00 : f32
      %42 = vector.broadcast %cst_19 : f32 to vector<8x8xf32>
      %43 = arith.select %40, %41, %42 : vector<8x8xi1>, vector<8x8xf32>
      %c3_i32 = arith.constant 3 : i32
      %44 = vector.broadcast %c3_i32 : i32 to vector<8x8xi32>
      %45 = arith.cmpi slt, %12, %44 : vector<8x8xi32>
      %c3_i32_20 = arith.constant 3 : i32
      %46 = vector.broadcast %c3_i32_20 : i32 to vector<8x8xi32>
      %47 = arith.cmpi slt, %13, %46 : vector<8x8xi32>
      %48 = arith.andi %45, %47 : vector<8x8xi1>
      %49 = arith.cmpi ne, %12, %13 : vector<8x8xi32>
      %50 = arith.andi %48, %49 : vector<8x8xi1>
      %cst_21 = arith.constant 2.000000e-01 : f32
      %51 = vector.broadcast %cst_21 : f32 to vector<8x8xf32>
      %52 = arith.cmpf ogt, %43, %51 : vector<8x8xf32>
      %53 = arith.andi %50, %52 : vector<8x8xi1>
      %cst_22 = arith.constant 1.000000e+00 : f32
      %54 = vector.broadcast %cst_22 : f32 to vector<8x8xf32>
      %55 = arith.cmpf ole, %43, %54 : vector<8x8xf32>
      %56 = arith.andi %53, %55 : vector<8x8xi1>
      %cst_23 = arith.constant 0.000000e+00 : f32
      %57 = vector.broadcast %cst_23 : f32 to vector<8x8xf32>
      %58 = arith.select %56, %43, %57 : vector<8x8xi1>, vector<8x8xf32>
      %59 = vector.shape_cast %58 : vector<8x8xf32> to vector<1x8x8xf32>
      %cst_24 = arith.constant dense<0.000000e+00> : vector<1xf32>
      %60 = vector.multi_reduction <add>, %59, %cst_24 [1, 2] : vector<1x8x8xf32> to vector<1xf32>
      %61 = vector.shape_cast %60 : vector<1xf32> to vector<1x1x1xf32>
      %62 = vector.extract %61[0, 0, 0] : f32 from vector<1x1x1xf32>
      %63 = vector.broadcast %62 : f32 to vector<1x128xf32>
      %c0_25 = arith.constant 0 : index
      %c0_26 = arith.constant 0 : index
      %64 = vector.load %arg2[%c0_25, %c0_26] : memref<1x128xf32, #tpu.memory_space<vmem>>, vector<1x128xf32>
      tpu.vector_store %arg2[%c0_25, %c0_26], %63 {strides = array<i32>} : memref<1x128xf32, #tpu.memory_space<vmem>>, vector<1x128xf32>,
    } else {
    }
    return
  }
  func.func @transform_0(%arg0: i32) -> (i32, i32) {
    %c0_i32 = arith.constant 0 : i32
    %c0_i32_0 = arith.constant 0 : i32
    return %c0_i32, %arg0 : i32, i32
  }
  func.func @transform_1(%arg0: i32) -> (i32, i32) {
    %c0_i32 = arith.constant 0 : i32
    %c0_i32_0 = arith.constant 0 : i32
    %c0_i32_1 = arith.constant 0 : i32
    return %c0_i32, %c0_i32_0 : i32, i32
  }
}

</mosaic_0001>

<llo_original>
// kernel: tpu_custom_call.1
$region0: #{tpu_custom_call.1}
  #allocation0 [shape = 'u32[]', space=smem, size = 0x4, offset = 0x4, fixed_abs, tag = 'smem constant byte address 0x4 - core index']
  #allocation1 [shape = 'u32[72,128]{1,0:T(1,128)}', space=vmem, size = 0x9000, scoped, tag = 'internal scratch']
  #allocation2 [shape = 'f32[8,8]{1,0:T(8,128)}', space=vmem, size = 0x1000, scoped, tag = 'scratch operand']
  %s0 = inlined_call_operand.hbm [shape: f32[8,256], index: 0, kind: input, shape index: {}]
  %s1 = inlined_call_operand.hbm [shape: f32[1,128], index: 1, kind: output, shape index: {}]
  %s2 = sld [smem:[#allocation0]]
  $region26: #{tpu_custom_call.1} parent=0
    _
  %s4 = ssub.s32 1, %s2
  %s5 = scalar_select 0, %s4, %s2
  $region1: #{tpu_custom_call.1} parent=0
    #allocation3 [shape = 'u8[8192]{0}', space=vmem, size = 0x2000, scoped, tag = 'input window, operand 0, single buffered']
    #allocation4 [shape = 's32[1]{0}', space=sflag, size = 0x4, scoped, tag = 'scoped memory for tpu_custom_call.1']
    #allocation5 [shape = 's32[1]{0}', space=sflag, size = 0x4, scoped, tag = 'scoped memory for tpu_custom_call.1']
    #allocation6 [shape = 'u8[512]{0}', space=vmem, size = 0x400, scoped, tag = 'output window, operand 0, single buffered']
    %6 = vsyncpa [#allocation4], 0
    %7 = vsyncpa [#allocation5], 0
    // Predicated region
    $region2: #{tpu_custom_call.1} parent=1 // pred_check
      _
    $region3: #{tpu_custom_call.1} parent=1 // pred_check_branch
      %9 = sbr.rel (0) target = $region5
    $region4: #{tpu_custom_call.1} parent=1 // pred_region
      %11 = vsyncadd [#allocation4], 0
      %s13 = sshll.u32 %s0, 4
      %s14 = int_to_ptr.hbm [resolvable:$true] %s13
      %s15 = sshll.u32 [#allocation3], 4
      %s16 = int_to_ptr.vmem [resolvable:$true] %s15
      %18 = dma.hbm_to_vmem [thread:$0]  %s14, 256, %s16, [#allocation4]
    $region5: #{tpu_custom_call.1} parent=1 // pred_fallthru
      _
    // Predicated region
    $region6: #{tpu_custom_call.1} parent=1 // pred_check
      _
    $region7: #{tpu_custom_call.1} parent=1 // pred_check_branch
      %20 = sbr.rel (0) target = $region9
    $region8: #{tpu_custom_call.1} parent=1 // pred_region
      %22 = dma.done [#allocation4], 256
    $region9: #{tpu_custom_call.1} parent=1 // pred_fallthru
      _
    %p23 = scmp.eq.s32.totalorder 0, 0
    // Predicated region
    $region10: #{tpu_custom_call.1} parent=1 // pred_check
      %p24 = pneg %p23
    $region11: #{tpu_custom_call.1} parent=1 // pred_check_branch
      %26 = sbr.rel (%p24) target = $region13
    $region12: #{tpu_custom_call.1} parent=1 // pred_region
      %vm27 = vcmask 64512
      %28 = vst.msk [vmem:[#allocation2] sm:$0xff] %vm27, 0.0
    $region13: #{tpu_custom_call.1} parent=1 // pred_fallthru
      _
    %v29 = vld [vmem:[#allocation3] sm:$0xff]
    %v30 = vld [vmem:[#allocation3 + $0x8] sm:$0xff]
    %v31 = vld [vmem:[#allocation2] sm:$0xff]
    %32 = vmatpush.xpose.msra.mxu0 0.0
    %33 = vmatpush.xpose.msra.mxu0 0.0
    %34 = vmatpush.xpose.msra.mxu0 0.0
    %35 = vmatpush.xpose.msra.mxu0 0.0
    %36 = vmatpush.xpose.msra.mxu0 0.0
    %37 = vmatpush.xpose.msra.mxu0 0.0
    %38 = vmatpush.xpose.msra.mxu0 0.0
    %39 = vmatpush.xpose.msra.mxu0 0.0
    %40 = vmatpush.xpose.msra.mxu0 0.0
    %41 = vmatpush.xpose.msra.mxu0 0.0
    %42 = vmatpush.xpose.msra.mxu0 0.0
    %43 = vmatpush.xpose.msra.mxu0 0.0
    %44 = vmatpush.xpose.msra.mxu0 0.0
    %45 = vmatpush.xpose.msra.mxu0 0.0
    %46 = vmatpush.xpose.msra.mxu0 0.0
    %47 = vmatpush.xpose.msra.mxu0 %v29
    %48 = vmatmul.f32.gmra.mxu0 %v29
    %v49 = vpop.f32.mrf.mxu0
    %v50 = vadd.f32 0.0, %v49
    %51 = vdwg.mxu0
    %52 = vmatpush.xpose.msra.mxu0 0.0
    %53 = vmatpush.xpose.msra.mxu0 0.0
    %54 = vmatpush.xpose.msra.mxu0 0.0
    %55 = vmatpush.xpose.msra.mxu0 0.0
    %56 = vmatpush.xpose.msra.mxu0 0.0
    %57 = vmatpush.xpose.msra.mxu0 0.0
    %58 = vmatpush.xpose.msra.mxu0 0.0
    %59 = vmatpush.xpose.msra.mxu0 0.0
    %60 = vmatpush.xpose.msra.mxu0 0.0
    %61 = vmatpush.xpose.msra.mxu0 0.0
    %62 = vmatpush.xpose.msra.mxu0 0.0
    %63 = vmatpush.xpose.msra.mxu0 0.0
    %64 = vmatpush.xpose.msra.mxu0 0.0
    %65 = vmatpush.xpose.msra.mxu0 0.0
    %66 = vmatpush.xpose.msra.mxu0 0.0
    %67 = vmatpush.xpose.msra.mxu0 %v30
    %68 = vmatmul.f32.gmra.mxu0 %v30
    %v69 = vpop.f32.mrf.mxu0
    %v70 = vadd.f32 %v50, %v69
    %71 = vdwg.mxu0
    %v72 = vadd.f32 %v31, %v70
    %vm73 = vcmask 64512
    %74 = vst.msk [vmem:[#allocation2] sm:$0xff] %vm73, %v72
    // Predicated region
    $region14: #{tpu_custom_call.1} parent=1 // pred_check
      %p75 = pneg %p23
    $region15: #{tpu_custom_call.1} parent=1 // pred_check_branch
      %77 = sbr.rel (%p75) target = $region17
    $region16: #{tpu_custom_call.1} parent=1 // pred_region
      %v78 = vld [vmem:[#allocation2] sm:$0xff]
      %v79 = vlaneseq
      %v80 = vshrl.u32 %v79, 7
      %v81 = vlaneseq
      %v82 = vand.u32 %v81, 127
      %vm83 = vcmp.eq.s32.totalorder %v80, %v82
      %v84 = vsel %vm83, %v78, 0.0
      %v85 = vsel %vm73, %v84, 0.0
      %86 = vadd.xlane.f32.xlu0 %v85
      %v87 = vpop.xlane.xlu0 %86
      %v88 = vrot.slane %v85, 4
      %v89 = vadd.f32 %v85, %v88
      %v90 = vrot.slane %v89, 2
      %v91 = vadd.f32 %v89, %v90
      %v92 = vrot.slane %v91, 1
      %v93 = vadd.f32 %v91, %v92
      %vm94 = vcmp.gt.f32.partialorder %v87, 0.0
      %v95 = vsel %vm94, %v87, 1.0
      %v96 = vrsqrt.pop %v95
      %v97 = vmul.f32 %v96, %v95
      %v98 = vmul.f32 %v97, %v96
      %v99 = vmul.f32 0.5, %v98
      %v100 = vsub.f32 1.5, %v99
      %v101 = vmul.f32 %v96, %v100
      %vm102 = vweird.f32 %v95
      %vm103 = vweird.f32 %v96
      %vm104 = vmor %vm102, %vm103
      %v105 = vsel %vm104, %v96, %v101
      %vm106 = vcmp.gt.f32.partialorder %v93, 0.0
      %v107 = vsel %vm106, %v93, 1.0
      %v108 = vrsqrt.pop %v107
      %v109 = vmul.f32 %v108, %v107
      %v110 = vmul.f32 %v109, %v108
      %v111 = vmul.f32 0.5, %v110
      %v112 = vsub.f32 1.5, %v111
      %v113 = vmul.f32 %v108, %v112
      %vm114 = vweird.f32 %v107
      %vm115 = vweird.f32 %v108
      %vm116 = vmor %vm114, %vm115
      %v117 = vsel %vm116, %v108, %v113
      %v118 = vmul.f32 %v105, %v117
      %v119 = vsel %vm94, 1, 0
      %vm120 = vcmp.eq.s32.totalorder %v119, 1
      %v121 = vsel %vm106, 1, 0
      %vm122 = vcmp.eq.s32.totalorder %v121, 1
      %vm123 = vmand %vm120, %vm122
      %v124 = vmul.f32 %v78, %v118
      %v125 = vsel %vm123, %v124, 0.0
      %vm126 = vcmp.lt.s32.totalorder %v80, 3
      %vm127 = vcmp.lt.s32.totalorder %v82, 3
      %vm128 = vmand %vm126, %vm127
      %vm129 = vcmp.ne.s32.totalorder %v80, %v82
      %vm130 = vmand %vm128, %vm129
      %vm131 = vcmp.gt.f32.partialorder %v125, 0.2
      %vm132 = vmand %vm130, %vm131
      %vm133 = vcmp.le.f32.partialorder %v125, 1.0
      %vm134 = vmand %vm132, %vm133
      %v135 = vsel %vm134, %v125, 0.0
      %v136 = vsel %vm73, %v135, 0.0
      %137 = vadd.xlane.f32.xlu0 %v136
      %v138 = vpop.xlane.xlu0 %137
      %v139 = vrot.slane %v138, 4
      %v140 = vadd.f32 %v138, %v139
      %v141 = vrot.slane %v140, 2
      %v142 = vadd.f32 %v140, %v141
      %v143 = vrot.slane %v142, 1
      %v144 = vadd.f32 %v142, %v143
      %s145 = vtos %v144
      %v146 = vstv %s145
      %147 = vst [vmem:[#allocation6] sm:$0x1] %v146
    $region17: #{tpu_custom_call.1} parent=1 // pred_fallthru
      _
    // Predicated region
    $region18: #{tpu_custom_call.1} parent=1 // pred_check
      _
    $region19: #{tpu_custom_call.1} parent=1 // pred_check_branch
      %149 = sbr.rel (0) target = $region21
    $region20: #{tpu_custom_call.1} parent=1 // pred_region
      %151 = vsyncadd [#allocation5], 0
      %s153 = sshll.u32 [#allocation6], 4
      %s154 = int_to_ptr.vmem [resolvable:$true] %s153
      %s155 = sshll.u32 %s1, 4
      %s156 = int_to_ptr.hbm [resolvable:$true] %s155
      %158 = dma.vmem_to_hbm [thread:$0]  %s154, 16, %s156, [#allocation5]
    $region21: #{tpu_custom_call.1} parent=1 // pred_fallthru
      _
    // Predicated region
    $region22: #{tpu_custom_call.1} parent=1 // pred_check
      _
    $region23: #{tpu_custom_call.1} parent=1 // pred_check_branch
      %160 = sbr.rel (0) target = $region25
    $region24: #{tpu_custom_call.1} parent=1 // pred_region
      %162 = dma.done [#allocation5], 16
    $region25: #{tpu_custom_call.1} parent=1 // pred_fallthru
      _
    %163 = vsyncpa [#allocation4], 1
    %164 = vsyncpa [#allocation5], 1

</llo_original>
